<compile_context>
chip_gen: v6e
topology: v6e:2x2x1
jax: 0.10.0
libtpu: 0.0.40
codegen_flags: <defaults>
</compile_context>

<pallas_src>
import functools

import jax
import jax.numpy as jnp
from jax.experimental import pallas as pl
from jax.experimental.pallas import tpu as pltpu


def _round_up(x, m):
    return ((x + m - 1) // m) * m


def _round_down(x, m):
    return (x // m) * m


def _choose_tile(b_rows, block_b, bytes_per_row, *, align=8,
                 vmem_budget=12 * 1024 * 1024, min_steps=8):
    """Pick a batch tile: multiple of `align`, <= block_b, <= VMEM budget,
    >= min_steps grid steps when the batch is large, never larger than the
    batch itself (so no block start falls outside the array)."""
    if b_rows <= align:
        return b_rows                      # single block equal to full batch dim
    cap_rows = max(align, _round_down(vmem_budget // max(bytes_per_row, 1), align))
    tb = _round_up(pl.cdiv(b_rows, min_steps), align)
    tb = min(tb, max(align, _round_down(block_b, align)), cap_rows)
    tb = max(tb, align)
    tb = min(tb, _round_down(b_rows, align))
    return tb


def _mlp_kernel(x_ref, *refs, acts):
    """Fused MLP: refs = (w0, b0, w1, b1, ..., out). Weights are [n_in, n_out],
    biases [1, n_out]; all matmuls accumulate in f32 on the MXU."""
    o_ref = refs[-1]
    h = x_ref[...]
    for li, act in enumerate(acts):
        w = refs[2 * li][...]
        b = refs[2 * li + 1][...]
        h = jnp.dot(h, w, preferred_element_type=jnp.float32) + b
        if act is not None:
            h = act(h)
    o_ref[...] = h.astype(o_ref.dtype)


def combined_ae_forward(inputs, params, *, l1_act, l2_act, l1_dec_act,
                        l2_dec_act, block_b=4096, fuse_decoder=True,
                        stream_bf16=False):
    """params hold PyTorch nn.Linear layout: weight [n_out, n_in], bias [n_out]."""
    w_e1, b_e1 = params["enc_l1"]
    w_e2, b_e2 = params["enc_l2"]
    w_d2, b_d2 = params["dec_l2"]
    w_d1, b_d1 = params["dec_l1"]

    n_in = w_e1.shape[1]                    # l1_model.n_outer
    x = inputs.reshape(-1, n_in)            # inputs.view(-1, n_outer)
    b_rows = x.shape[0]

    f32 = jnp.float32
    # Layer list as (W^T [n_in, n_out], b [1, n_out], activation-or-None).
    layers = [
        (w_e1.T.astype(f32), b_e1.reshape(1, -1).astype(f32), l1_act),
        (w_e2.T.astype(f32), b_e2.reshape(1, -1).astype(f32), l2_act),
    ]
    if fuse_decoder and not l2_dec_act:
        # dec_l2 followed (with no activation in between) by dec_l1 collapses
        # to one affine layer: W = W_d2^T @ W_d1^T, b = b_d2 @ W_d1^T + b_d1.
        w_d2_t = w_d2.T.astype(f32)
        w_d1_t = w_d1.T.astype(f32)
        w_fused = w_d2_t @ w_d1_t
        b_fused = (b_d2.reshape(1, -1).astype(f32) @ w_d1_t
                   + b_d1.reshape(1, -1).astype(f32))
        layers.append((w_fused, b_fused, l1_act if l1_dec_act else None))
    else:
        layers.append((w_d2.T.astype(f32), b_d2.reshape(1, -1).astype(f32),
                       l2_act if l2_dec_act else None))
        layers.append((w_d1.T.astype(f32), b_d1.reshape(1, -1).astype(f32),
                       l1_act if l1_dec_act else None))

    n_out = layers[-1][0].shape[1]
    out_dtype = inputs.dtype
    if stream_bf16:
        # Halves streamed HBM bytes; numerics differ slightly from f32 reference.
        x = x.astype(jnp.bfloat16)
        out_dtype = jnp.bfloat16

    # Batch tile sizing (see _choose_tile): double-buffered x/out tiles plus
    # the f32 intermediates of every layer, per row.
    io_itemsize = jnp.dtype(x.dtype).itemsize
    inter_cols = sum(w.shape[1] for w, _, _ in layers)
    bytes_per_row = 2 * (n_in + n_out) * io_itemsize + 4 * inter_cols
    tb = _choose_tile(b_rows, block_b, bytes_per_row)
    grid = pl.cdiv(b_rows, tb)

    acts = tuple(a for _, _, a in layers)
    kernel = functools.partial(_mlp_kernel, acts=acts)

    # Weights/biases: full blocks with a constant index map -> stay resident in
    # VMEM across all grid steps (no re-DMA). x/out stream one row-tile per step.
    flat_wb = []
    wb_specs = []
    for w_t, b2, _ in layers:
        flat_wb += [w_t, b2]
        wb_specs += [pl.BlockSpec(w_t.shape, lambda i: (0, 0)),
                     pl.BlockSpec(b2.shape, lambda i: (0, 0))]

    out = pl.pallas_call(
        kernel,
        out_shape=jax.ShapeDtypeStruct((b_rows, n_out), out_dtype),
        grid=(grid,),
        in_specs=[pl.BlockSpec((tb, n_in), lambda i: (i, 0))] + wb_specs,
        out_specs=pl.BlockSpec((tb, n_out), lambda i: (i, 0)),
        compiler_params=pltpu.CompilerParams(
            dimension_semantics=("parallel",)),
    )(x, *flat_wb)
    return out


if __name__ == "__main__":
    # Small shapes consistent with a stacked AE:
    #   l1_model: n_outer=64, n_hid1=32, enc_activation=tanh,    dec_activation=True
    #   l2_model: n_outer=32, n_hid1=16, enc_activation=sigmoid, dec_activation=False
    n_outer1, n_hid1_1 = 64, 32
    n_outer2, n_hid1_2 = 32, 16          # l2.n_outer == l1.n_hid1
    l1_act, l2_act = jnp.tanh, jax.nn.sigmoid
    l1_dec_act, l2_dec_act = True, False

    key = jax.random.PRNGKey(0)
    kx, k1, k2, k3, k4, k5, k6, k7, k8 = jax.random.split(key, 9)

    def linear_init(kw, kb, n_out, n_in):
        # nn.Linear default init: U(-1/sqrt(n_in), 1/sqrt(n_in)).
        bound = 1.0 / jnp.sqrt(jnp.float32(n_in))
        w = jax.random.uniform(kw, (n_out, n_in), jnp.float32, -bound, bound)
        b = jax.random.uniform(kb, (n_out,), jnp.float32, -bound, bound)
        return w, b

    params = {
        "enc_l1": linear_init(k1, k2, n_hid1_1, n_outer1),
        "enc_l2": linear_init(k3, k4, n_hid1_2, n_outer2),
        "dec_l2": linear_init(k5, k6, n_outer2, n_hid1_2),
        "dec_l1": linear_init(k7, k8, n_outer1, n_hid1_1),
    }

    inputs = jax.random.normal(kx, (2, 4, n_outer1), jnp.float32)

    out = combined_ae_forward(inputs, params,
                              l1_act=l1_act, l2_act=l2_act,
                              l1_dec_act=l1_dec_act, l2_dec_act=l2_dec_act)
    out = jax.block_until_ready(out)

    # Pure-JAX reference mirroring Combined_AE.forward exactly (unfused).
    x = inputs.reshape(-1, n_outer1)
    w_e1, b_e1 = params["enc_l1"]
    w_e2, b_e2 = params["enc_l2"]
    w_d2, b_d2 = params["dec_l2"]
    w_d1, b_d1 = params["dec_l1"]
    h = l1_act(x @ w_e1.T + b_e1)
    h = l2_act(h @ w_e2.T + b_e2)
    h = h @ w_d2.T + b_d2
    if l2_dec_act:
        h = l2_act(h)
    h = h @ w_d1.T + b_d1
    if l1_dec_act:
        h = l1_act(h)
    ref = h

    assert out.shape == ref.shape, f"shape mismatch {out.shape} vs {ref.shape}"
    assert jnp.allclose(out, ref, atol=1e-5, rtol=1e-5), "mismatch vs reference"
    print("KERNEL_OK")
</pallas_src>

<mosaic_0001>
module attributes {stable_mosaic.version = 11 : i64} {
  func.func @_mlp_kernel(%arg0: i32, %arg1: memref<8x64xf32, #tpu.memory_space<vmem>>, %arg2: memref<64x32xf32, #tpu.memory_space<vmem>>, %arg3: memref<1x32xf32, #tpu.memory_space<vmem>>, %arg4: memref<32x16xf32, #tpu.memory_space<vmem>>, %arg5: memref<1x16xf32, #tpu.memory_space<vmem>>, %arg6: memref<16x64xf32, #tpu.memory_space<vmem>>, %arg7: memref<1x64xf32, #tpu.memory_space<vmem>>, %arg8: memref<8x64xf32, #tpu.memory_space<vmem>>) attributes {dimension_semantics = [#tpu.dimension_semantics<parallel>], iteration_bounds = array<i64: 1>, scalar_prefetch = 0 : i64, scratch_operands = 0 : i64, tpu.core_type = #tpu.core_type<tc>, window_params = [{transform_indices = @transform_0, window_bounds = array<i64: 8, 64>}, {pipeline_mode = #tpu.pipeline_mode<synchronous>, transform_indices = @transform_1, window_bounds = array<i64: 64, 32>}, {pipeline_mode = #tpu.pipeline_mode<synchronous>, transform_indices = @transform_2, window_bounds = array<i64: 1, 32>}, {pipeline_mode = #tpu.pipeline_mode<synchronous>, transform_indices = @transform_3, window_bounds = array<i64: 32, 16>}, {pipeline_mode = #tpu.pipeline_mode<synchronous>, transform_indices = @transform_4, window_bounds = array<i64: 1, 16>}, {pipeline_mode = #tpu.pipeline_mode<synchronous>, transform_indices = @transform_5, window_bounds = array<i64: 16, 64>}, {pipeline_mode = #tpu.pipeline_mode<synchronous>, transform_indices = @transform_6, window_bounds = array<i64: 1, 64>}, {transform_indices = @transform_7, window_bounds = array<i64: 8, 64>}]} {
    %c0 = arith.constant 0 : index
    %c0_0 = arith.constant 0 : index
    %0 = vector.load %arg1[%c0, %c0_0] : memref<8x64xf32, #tpu.memory_space<vmem>>, vector<8x64xf32>
    %c0_1 = arith.constant 0 : index
    %c0_2 = arith.constant 0 : index
    %1 = vector.load %arg2[%c0_1, %c0_2] : memref<64x32xf32, #tpu.memory_space<vmem>>, vector<64x32xf32>
    %c0_3 = arith.constant 0 : index
    %c0_4 = arith.constant 0 : index
    %2 = vector.load %arg3[%c0_3, %c0_4] : memref<1x32xf32, #tpu.memory_space<vmem>>, vector<1x32xf32>
    %cst = arith.constant dense<0.000000e+00> : vector<8x32xf32>
    %3 = tpu.matmul %0, %1, %cst {dimension_numbers = #tpu.dot_dimension_numbers<[1], [0], [0], [1], [0, 0, 1, 1], [], []>} : vector<8x64xf32>, vector<64x32xf32>, vector<8x32xf32> -> vector<8x32xf32>
    %4 = vector.broadcast %2 : vector<1x32xf32> to vector<8x32xf32>
    %5 = arith.addf %3, %4 : vector<8x32xf32>
    %6 = math.tanh %5 : vector<8x32xf32>
    %c0_5 = arith.constant 0 : index
    %c0_6 = arith.constant 0 : index
    %7 = vector.load %arg4[%c0_5, %c0_6] : memref<32x16xf32, #tpu.memory_space<vmem>>, vector<32x16xf32>
    %c0_7 = arith.constant 0 : index
    %c0_8 = arith.constant 0 : index
    %8 = vector.load %arg5[%c0_7, %c0_8] : memref<1x16xf32, #tpu.memory_space<vmem>>, vector<1x16xf32>
    %cst_9 = arith.constant dense<0.000000e+00> : vector<8x16xf32>
    %9 = tpu.matmul %6, %7, %cst_9 {dimension_numbers = #tpu.dot_dimension_numbers<[1], [0], [0], [1], [0, 0, 1, 1], [], []>} : vector<8x32xf32>, vector<32x16xf32>, vector<8x16xf32> -> vector<8x16xf32>
    %10 = vector.broadcast %8 : vector<1x16xf32> to vector<8x16xf32>
    %11 = arith.addf %9, %10 : vector<8x16xf32>
    %12 = arith.negf %11 : vector<8x16xf32>
    %13 = math.exp %12 : vector<8x16xf32>
    %cst_10 = arith.constant 1.000000e+00 : f32
    %14 = vector.broadcast %cst_10 : f32 to vector<8x16xf32>
    %15 = arith.addf %14, %13 : vector<8x16xf32>
    %16 = arith.divf %14, %15 : vector<8x16xf32>
    %c0_11 = arith.constant 0 : index
    %c0_12 = arith.constant 0 : index
    %17 = vector.load %arg6[%c0_11, %c0_12] : memref<16x64xf32, #tpu.memory_space<vmem>>, vector<16x64xf32>
    %c0_13 = arith.constant 0 : index
    %c0_14 = arith.constant 0 : index
    %18 = vector.load %arg7[%c0_13, %c0_14] : memref<1x64xf32, #tpu.memory_space<vmem>>, vector<1x64xf32>
    %cst_15 = arith.constant dense<0.000000e+00> : vector<8x64xf32>
    %19 = tpu.matmul %16, %17, %cst_15 {dimension_numbers = #tpu.dot_dimension_numbers<[1], [0], [0], [1], [0, 0, 1, 1], [], []>} : vector<8x16xf32>, vector<16x64xf32>, vector<8x64xf32> -> vector<8x64xf32>
    %20 = vector.broadcast %18 : vector<1x64xf32> to vector<8x64xf32>
    %21 = arith.addf %19, %20 : vector<8x64xf32>
    %22 = math.tanh %21 : vector<8x64xf32>
    %c0_16 = arith.constant 0 : index
    %c0_17 = arith.constant 0 : index
    %23 = vector.load %arg8[%c0_16, %c0_17] : memref<8x64xf32, #tpu.memory_space<vmem>>, vector<8x64xf32>
    tpu.vector_store %arg8[%c0_16, %c0_17], %22 {strides = array<i32>} : memref<8x64xf32, #tpu.memory_space<vmem>>, vector<8x64xf32>,
    return
  }
  func.func @transform_0(%arg0: i32) -> (i32, i32) {
    %c0_i32 = arith.constant 0 : i32
    %c0_i32_0 = arith.constant 0 : i32
    return %arg0, %c0_i32 : i32, i32
  }
  func.func @transform_1(%arg0: i32) -> (i32, i32) {
    %c0_i32 = arith.constant 0 : i32
    %c0_i32_0 = arith.constant 0 : i32
    %c0_i32_1 = arith.constant 0 : i32
    return %c0_i32, %c0_i32_0 : i32, i32
  }
  func.func @transform_2(%arg0: i32) -> (i32, i32) {
    %c0_i32 = arith.constant 0 : i32
    %c0_i32_0 = arith.constant 0 : i32
    %c0_i32_1 = arith.constant 0 : i32
    return %c0_i32, %c0_i32_0 : i32, i32
  }
  func.func @transform_3(%arg0: i32) -> (i32, i32) {
    %c0_i32 = arith.constant 0 : i32
    %c0_i32_0 = arith.constant 0 : i32
    %c0_i32_1 = arith.constant 0 : i32
    return %c0_i32, %c0_i32_0 : i32, i32
  }
  func.func @transform_4(%arg0: i32) -> (i32, i32) {
    %c0_i32 = arith.constant 0 : i32
    %c0_i32_0 = arith.constant 0 : i32
    %c0_i32_1 = arith.constant 0 : i32
    return %c0_i32, %c0_i32_0 : i32, i32
  }
  func.func @transform_5(%arg0: i32) -> (i32, i32) {
    %c0_i32 = arith.constant 0 : i32
    %c0_i32_0 = arith.constant 0 : i32
    %c0_i32_1 = arith.constant 0 : i32
    return %c0_i32, %c0_i32_0 : i32, i32
  }
  func.func @transform_6(%arg0: i32) -> (i32, i32) {
    %c0_i32 = arith.constant 0 : i32
    %c0_i32_0 = arith.constant 0 : i32
    %c0_i32_1 = arith.constant 0 : i32
    return %c0_i32, %c0_i32_0 : i32, i32
  }
  func.func @transform_7(%arg0: i32) -> (i32, i32) {
    %c0_i32 = arith.constant 0 : i32
    %c0_i32_0 = arith.constant 0 : i32
    return %arg0, %c0_i32 : i32, i32
  }
}

</mosaic_0001>

<llo_original>
// kernel: tpu_custom_call.1
$region0: #{tpu_custom_call.1}
  #allocation0 [shape = 'u32[]', space=smem, size = 0x4, offset = 0x4, fixed_abs, tag = 'smem constant byte address 0x4 - core index']
  #allocation1 [shape = 'u32[144,128]{1,0:T(1,128)}', space=vmem, size = 0x12000, scoped, tag = 'internal scratch']
  %s0 = inlined_call_operand.vmem [shape: f32[8,64], index: 0, kind: input, shape index: {}]
  %s1 = inlined_call_operand.vmem [shape: f32[64,32], index: 1, kind: input, shape index: {}]
  %s2 = inlined_call_operand.vmem [shape: f32[1,32], index: 2, kind: input, shape index: {}]
  %s3 = inlined_call_operand.vmem [shape: f32[32,16], index: 3, kind: input, shape index: {}]
  %s4 = inlined_call_operand.vmem [shape: f32[1,16], index: 4, kind: input, shape index: {}]
  %s5 = inlined_call_operand.vmem [shape: f32[16,64], index: 5, kind: input, shape index: {}]
  %s6 = inlined_call_operand.vmem [shape: f32[1,64], index: 6, kind: input, shape index: {}]
  %s7 = inlined_call_operand.hbm [shape: f32[8,64], index: 7, kind: output, shape index: {}]
  %s8 = sld [smem:[#allocation0]]
  $region38: #{tpu_custom_call.1} parent=0
    _
  %s10 = ssub.s32 1, %s8
  %s11 = scalar_select 0, %s10, %s8
  $region1: #{tpu_custom_call.1} parent=0
    #allocation2 [shape = 'u8[4096]{0}', space=vmem, size = 0x1000, scoped, tag = 'output window, operand 0, single buffered']
    #allocation3 [shape = 's32[1]{0}', space=sflag, size = 0x4, scoped, tag = 'scoped memory for tpu_custom_call.1']
    %12 = vsyncpa [#allocation3], 0
    // Predicated region
    $region2: #{tpu_custom_call.1} parent=1 // pred_check
      _
    $region3: #{tpu_custom_call.1} parent=1 // pred_check_branch
      %14 = sbr.rel (0) target = $region5
    $region4: #{tpu_custom_call.1} parent=1 // pred_region
      _
    $region5: #{tpu_custom_call.1} parent=1 // pred_fallthru
      _
    // Predicated region
    $region6: #{tpu_custom_call.1} parent=1 // pred_check
      _
    $region7: #{tpu_custom_call.1} parent=1 // pred_check_branch
      %16 = sbr.rel (0) target = $region9
    $region8: #{tpu_custom_call.1} parent=1 // pred_region
      _
    $region9: #{tpu_custom_call.1} parent=1 // pred_fallthru
      _
    // Predicated region
    $region10: #{tpu_custom_call.1} parent=1 // pred_check
      _
    $region11: #{tpu_custom_call.1} parent=1 // pred_check_branch
      %18 = sbr.rel (0) target = $region13
    $region12: #{tpu_custom_call.1} parent=1 // pred_region
      _
    $region13: #{tpu_custom_call.1} parent=1 // pred_fallthru
      _
    // Predicated region
    $region14: #{tpu_custom_call.1} parent=1 // pred_check
      _
    $region15: #{tpu_custom_call.1} parent=1 // pred_check_branch
      %20 = sbr.rel (0) target = $region17
    $region16: #{tpu_custom_call.1} parent=1 // pred_region
      _
    $region17: #{tpu_custom_call.1} parent=1 // pred_fallthru
      _
    // Predicated region
    $region18: #{tpu_custom_call.1} parent=1 // pred_check
      _
    $region19: #{tpu_custom_call.1} parent=1 // pred_check_branch
      %22 = sbr.rel (0) target = $region21
    $region20: #{tpu_custom_call.1} parent=1 // pred_region
      _
    $region21: #{tpu_custom_call.1} parent=1 // pred_fallthru
      _
    // Predicated region
    $region22: #{tpu_custom_call.1} parent=1 // pred_check
      _
    $region23: #{tpu_custom_call.1} parent=1 // pred_check_branch
      %24 = sbr.rel (0) target = $region25
    $region24: #{tpu_custom_call.1} parent=1 // pred_region
      _
    $region25: #{tpu_custom_call.1} parent=1 // pred_fallthru
      _
    // Predicated region
    $region26: #{tpu_custom_call.1} parent=1 // pred_check
      _
    $region27: #{tpu_custom_call.1} parent=1 // pred_check_branch
      %26 = sbr.rel (0) target = $region29
    $region28: #{tpu_custom_call.1} parent=1 // pred_region
      _
    $region29: #{tpu_custom_call.1} parent=1 // pred_fallthru
      _
    %v27 = vld [vmem:[%s0] sm:$0xff]
    %v28 = vld [vmem:[%s1] sm:$0xff]
    %v29 = vld [vmem:[%s1 + $0x8] sm:$0xff]
    %v30 = vld [vmem:[%s1 + $0x10] sm:$0xff]
    %v31 = vld [vmem:[%s1 + $0x18] sm:$0xff]
    %v32 = vld [vmem:[%s1 + $0x20] sm:$0xff]
    %v33 = vld [vmem:[%s1 + $0x28] sm:$0xff]
    %v34 = vld [vmem:[%s1 + $0x30] sm:$0xff]
    %v35 = vld [vmem:[%s1 + $0x38] sm:$0xff]
    %v36 = vld [vmem:[%s2] sm:$0x1]
    %v38 = vlaneseq
    %v39 = vshrl.u32 %v38, 7
    %v40 = vsub.s32 0, %v39
    %v41 = vrot.slane %v36, %v40
    %vm43 = vcmask 523264
    %v45 = vsel %vm43, %v27, 0
    %47 = vmatprep.subr.mxu0 0.0
    %48 = vmatpush1.msra.mxu0 0.0
    %49 = vmatprep.subr.mxu0 0.0
    %50 = vmatpush1.msra.mxu0 0.0
    %51 = vmatprep.subr.mxu0 0.0
    %52 = vmatpush1.msra.mxu0 0.0
    %53 = vmatprep.subr.mxu0 0.0
    %54 = vmatpush1.msra.mxu0 0.0
    %55 = vmatprep.subr.mxu0 0.0
    %56 = vmatpush1.msra.mxu0 0.0
    %57 = vmatprep.subr.mxu0 0.0
    %58 = vmatpush1.msra.mxu0 0.0
    %59 = vmatprep.subr.mxu0 0.0
    %60 = vmatpush1.msra.mxu0 0.0
    %61 = vmatprep.subr.mxu0 0.0
    %62 = vmatpush1.msra.mxu0 0.0
    %63 = vmatprep.subr.mxu0 0.0
    %64 = vmatpush1.msra.mxu0 %v35
    %65 = vmatprep.subr.mxu0 0.0
    %66 = vmatpush1.msra.mxu0 %v34
    %67 = vmatprep.subr.mxu0 0.0
    %68 = vmatpush1.msra.mxu0 %v33
    %69 = vmatprep.subr.mxu0 0.0
    %70 = vmatpush1.msra.mxu0 %v32
    %71 = vmatprep.subr.mxu0 0.0
    %72 = vmatpush1.msra.mxu0 %v31
    %73 = vmatprep.subr.mxu0 0.0
    %74 = vmatpush1.msra.mxu0 %v30
    %75 = vmatprep.subr.mxu0 0.0
    %76 = vmatpush1.msra.mxu0 %v29
    %77 = vmatprep.subr.mxu0 0.0
    %78 = vmatpush1.msra.mxu0 %v28
    %79 = vmatprep.subr.mxu0 0.0
    %80 = vmatpush2.msra.mxu0 0.0
    %81 = vmatprep.subr.mxu0 0.0
    %82 = vmatpush2.msra.mxu0 0.0
    %83 = vmatprep.subr.mxu0 0.0
    %84 = vmatpush2.msra.mxu0 0.0
    %85 = vmatprep.subr.mxu0 0.0
    %86 = vmatpush2.msra.mxu0 0.0
    %87 = vmatprep.subr.mxu0 0.0
    %88 = vmatpush2.msra.mxu0 0.0
    %89 = vmatprep.subr.mxu0 0.0
    %90 = vmatpush2.msra.mxu0 0.0
    %91 = vmatprep.subr.mxu0 0.0
    %92 = vmatpush2.msra.mxu0 0.0
    %93 = vmatprep.subr.mxu0 0.0
    %94 = vmatpush2.msra.mxu0 0.0
    %95 = vmatprep.subr.mxu0 0.0
    %96 = vmatpush2.msra.mxu0 0.0
    %97 = vmatprep.subr.mxu0 0.0
    %98 = vmatpush2.msra.mxu0 0.0
    %99 = vmatprep.subr.mxu0 0.0
    %100 = vmatpush2.msra.mxu0 0.0
    %101 = vmatprep.subr.mxu0 0.0
    %102 = vmatpush2.msra.mxu0 0.0
    %103 = vmatprep.subr.mxu0 0.0
    %104 = vmatpush2.msra.mxu0 0.0
    %105 = vmatprep.subr.mxu0 0.0
    %106 = vmatpush2.msra.mxu0 0.0
    %107 = vmatprep.subr.mxu0 0.0
    %108 = vmatpush2.msra.mxu0 0.0
    %109 = vmatprep.subr.mxu0 0.0
    %110 = vmatpush2.msra.mxu0 0.0
    %111 = vmatprep.mubr.f32.mxu0 0.0
    %112 = vmatmul.mubr.f32.gmra.mxu0 %v45
    %v113 = vpop.f32.mrf.mxu0
    %v114 = vadd.f32 %v41, %v113
    %v115 = vpop.f32.mrf.mxu0
    %116 = vdwg.mxu0
    %v117 = vtanh.pop %v114
    %v118 = vld [vmem:[%s3] sm:$0xff]
    %v119 = vld [vmem:[%s3 + $0x8] sm:$0xff]
    %v120 = vld [vmem:[%s3 + $0x10] sm:$0xff]
    %v121 = vld [vmem:[%s3 + $0x18] sm:$0xff]
    %v122 = vld [vmem:[%s4] sm:$0x1]
    %v124 = vlaneseq
    %v125 = vshrl.u32 %v124, 7
    %v126 = vsub.s32 0, %v125
    %v127 = vrot.slane %v122, %v126
    %vm129 = vcmask 261120
    %v131 = vsel %vm129, %v117, 0
    %133 = vmatprep.subr.mxu0 0.0
    %134 = vmatpush1.msra.mxu0 0.0
    %135 = vmatprep.subr.mxu0 0.0
    %136 = vmatpush1.msra.mxu0 0.0
    %137 = vmatprep.subr.mxu0 0.0
    %138 = vmatpush1.msra.mxu0 0.0
    %139 = vmatprep.subr.mxu0 0.0
    %140 = vmatpush1.msra.mxu0 0.0
    %141 = vmatprep.subr.mxu0 0.0
    %142 = vmatpush1.msra.mxu0 0.0
    %143 = vmatprep.subr.mxu0 0.0
    %144 = vmatpush1.msra.mxu0 0.0
    %145 = vmatprep.subr.mxu0 0.0
    %146 = vmatpush1.msra.mxu0 0.0
    %147 = vmatprep.subr.mxu0 0.0
    %148 = vmatpush1.msra.mxu0 0.0
    %149 = vmatprep.subr.mxu0 0.0
    %150 = vmatpush1.msra.mxu0 0.0
    %151 = vmatprep.subr.mxu0 0.0
    %152 = vmatpush1.msra.mxu0 0.0
    %153 = vmatprep.subr.mxu0 0.0
    %154 = vmatpush1.msra.mxu0 0.0
    %155 = vmatprep.subr.mxu0 0.0
    %156 = vmatpush1.msra.mxu0 0.0
    %157 = vmatprep.subr.mxu0 0.0
    %158 = vmatpush1.msra.mxu0 %v121
    %159 = vmatprep.subr.mxu0 0.0
    %160 = vmatpush1.msra.mxu0 %v120
    %161 = vmatprep.subr.mxu0 0.0
    %162 = vmatpush1.msra.mxu0 %v119
    %163 = vmatprep.subr.mxu0 0.0
    %164 = vmatpush1.msra.mxu0 %v118
    %165 = vmatprep.subr.mxu0 0.0
    %166 = vmatpush2.msra.mxu0 0.0
    %167 = vmatprep.subr.mxu0 0.0
    %168 = vmatpush2.msra.mxu0 0.0
    %169 = vmatprep.subr.mxu0 0.0
    %170 = vmatpush2.msra.mxu0 0.0
    %171 = vmatprep.subr.mxu0 0.0
    %172 = vmatpush2.msra.mxu0 0.0
    %173 = vmatprep.subr.mxu0 0.0
    %174 = vmatpush2.msra.mxu0 0.0
    %175 = vmatprep.subr.mxu0 0.0
    %176 = vmatpush2.msra.mxu0 0.0
    %177 = vmatprep.subr.mxu0 0.0
    %178 = vmatpush2.msra.mxu0 0.0
    %179 = vmatprep.subr.mxu0 0.0
    %180 = vmatpush2.msra.mxu0 0.0
    %181 = vmatprep.subr.mxu0 0.0
    %182 = vmatpush2.msra.mxu0 0.0
    %183 = vmatprep.subr.mxu0 0.0
    %184 = vmatpush2.msra.mxu0 0.0
    %185 = vmatprep.subr.mxu0 0.0
    %186 = vmatpush2.msra.mxu0 0.0
    %187 = vmatprep.subr.mxu0 0.0
    %188 = vmatpush2.msra.mxu0 0.0
    %189 = vmatprep.subr.mxu0 0.0
    %190 = vmatpush2.msra.mxu0 0.0
    %191 = vmatprep.subr.mxu0 0.0
    %192 = vmatpush2.msra.mxu0 0.0
    %193 = vmatprep.subr.mxu0 0.0
    %194 = vmatpush2.msra.mxu0 0.0
    %195 = vmatprep.subr.mxu0 0.0
    %196 = vmatpush2.msra.mxu0 0.0
    %197 = vmatprep.mubr.f32.mxu0 0.0
    %198 = vmatmul.mubr.f32.gmra.mxu0 %v131
    %v199 = vpop.f32.mrf.mxu0
    %v200 = vadd.f32 %v127, %v199
    %v201 = vpop.f32.mrf.mxu0
    %202 = vdwg.mxu0
    %v203 = vxor.u32 %v200, 2147483648
    %v204 = vmul.f32 %v203, 1.442695
    %v205 = vpow.pop %v204
    %v206 = vadd.f32 %v205, 1.0
    %v207 = vrcp.pop %v206
    %v208 = vmul.f32 1.0, %v207
    %v209 = vld [vmem:[%s5] sm:$0xff]
    %v210 = vld [vmem:[%s5 + $0x8] sm:$0xff]
    %v211 = vld [vmem:[%s6] sm:$0x1]
    %v213 = vlaneseq
    %v214 = vshrl.u32 %v213, 7
    %v215 = vsub.s32 0, %v214
    %v216 = vrot.slane %v211, %v215
    %vm218 = vcmask 130048
    %v220 = vsel %vm218, %v208, 0
    %222 = vmatprep.subr.mxu0 0.0
    %223 = vmatpush1.msra.mxu0 0.0
    %224 = vmatprep.subr.mxu0 0.0
    %225 = vmatpush1.msra.mxu0 0.0
    %226 = vmatprep.subr.mxu0 0.0
    %227 = vmatpush1.msra.mxu0 0.0
    %228 = vmatprep.subr.mxu0 0.0
    %229 = vmatpush1.msra.mxu0 0.0
    %230 = vmatprep.subr.mxu0 0.0
    %231 = vmatpush1.msra.mxu0 0.0
    %232 = vmatprep.subr.mxu0 0.0
    %233 = vmatpush1.msra.mxu0 0.0
    %234 = vmatprep.subr.mxu0 0.0
    %235 = vmatpush1.msra.mxu0 0.0
    %236 = vmatprep.subr.mxu0 0.0
    %237 = vmatpush1.msra.mxu0 0.0
    %238 = vmatprep.subr.mxu0 0.0
    %239 = vmatpush1.msra.mxu0 0.0
    %240 = vmatprep.subr.mxu0 0.0
    %241 = vmatpush1.msra.mxu0 0.0
    %242 = vmatprep.subr.mxu0 0.0
    %243 = vmatpush1.msra.mxu0 0.0
    %244 = vmatprep.subr.mxu0 0.0
    %245 = vmatpush1.msra.mxu0 0.0
    %246 = vmatprep.subr.mxu0 0.0
    %247 = vmatpush1.msra.mxu0 0.0
    %248 = vmatprep.subr.mxu0 0.0
    %249 = vmatpush1.msra.mxu0 0.0
    %250 = vmatprep.subr.mxu0 0.0
    %251 = vmatpush1.msra.mxu0 %v210
    %252 = vmatprep.subr.mxu0 0.0
    %253 = vmatpush1.msra.mxu0 %v209
    %254 = vmatprep.subr.mxu0 0.0
    %255 = vmatpush2.msra.mxu0 0.0
    %256 = vmatprep.subr.mxu0 0.0
    %257 = vmatpush2.msra.mxu0 0.0
    %258 = vmatprep.subr.mxu0 0.0
    %259 = vmatpush2.msra.mxu0 0.0
    %260 = vmatprep.subr.mxu0 0.0
    %261 = vmatpush2.msra.mxu0 0.0
    %262 = vmatprep.subr.mxu0 0.0
    %263 = vmatpush2.msra.mxu0 0.0
    %264 = vmatprep.subr.mxu0 0.0
    %265 = vmatpush2.msra.mxu0 0.0
    %266 = vmatprep.subr.mxu0 0.0
    %267 = vmatpush2.msra.mxu0 0.0
    %268 = vmatprep.subr.mxu0 0.0
    %269 = vmatpush2.msra.mxu0 0.0
    %270 = vmatprep.subr.mxu0 0.0
    %271 = vmatpush2.msra.mxu0 0.0
    %272 = vmatprep.subr.mxu0 0.0
    %273 = vmatpush2.msra.mxu0 0.0
    %274 = vmatprep.subr.mxu0 0.0
    %275 = vmatpush2.msra.mxu0 0.0
    %276 = vmatprep.subr.mxu0 0.0
    %277 = vmatpush2.msra.mxu0 0.0
    %278 = vmatprep.subr.mxu0 0.0
    %279 = vmatpush2.msra.mxu0 0.0
    %280 = vmatprep.subr.mxu0 0.0
    %281 = vmatpush2.msra.mxu0 0.0
    %282 = vmatprep.subr.mxu0 0.0
    %283 = vmatpush2.msra.mxu0 0.0
    %284 = vmatprep.subr.mxu0 0.0
    %285 = vmatpush2.msra.mxu0 0.0
    %286 = vmatprep.mubr.f32.mxu0 0.0
    %287 = vmatmul.mubr.f32.gmra.mxu0 %v220
    %v288 = vpop.f32.mrf.mxu0
    %v289 = vadd.f32 %v216, %v288
    %v290 = vpop.f32.mrf.mxu0
    %291 = vdwg.mxu0
    %v292 = vtanh.pop %v289
    %293 = vst.msk [vmem:[#allocation2] sm:$0xff] %vm43, %v292
    // Predicated region
    $region30: #{tpu_custom_call.1} parent=1 // pred_check
      _
    $region31: #{tpu_custom_call.1} parent=1 // pred_check_branch
      %295 = sbr.rel (0) target = $region33
    $region32: #{tpu_custom_call.1} parent=1 // pred_region
      %s297 = ssub.s32 128, 128
      %298 = vsyncadd [#allocation3], %s297
      %s300 = sshll.u32 [#allocation2], 4
      %s301 = int_to_ptr.vmem [resolvable:$true] %s300
      %303 = dma.vmem_to_hbm [thread:$0]  %s301, 128, %s7, [#allocation3]
    $region33: #{tpu_custom_call.1} parent=1 // pred_fallthru
      _
    // Predicated region
    $region34: #{tpu_custom_call.1} parent=1 // pred_check
      _
    $region35: #{tpu_custom_call.1} parent=1 // pred_check_branch
      %305 = sbr.rel (0) target = $region37
    $region36: #{tpu_custom_call.1} parent=1 // pred_region
      %306 = dma.done [#allocation3], 128
    $region37: #{tpu_custom_call.1} parent=1 // pred_fallthru
      _
    %307 = vsyncpa [#allocation3], 1

</llo_original>
